<compile_context>
chip_gen: v7x
topology: tpu7x:2x2x1
jax: 0.10.0
libtpu: 0.0.40
codegen_flags: <defaults>
</compile_context>

<pallas_src>
import functools

import jax
import jax.numpy as jnp
import numpy as np
from jax.experimental import pallas as pl
from jax.experimental.pallas import tpu as pltpu

_AMP_PAD = 128  # lane width; the amp crop (S*S <= 128) is padded to this


@functools.lru_cache(maxsize=None)
def _build_operators(H, W, padding_size, prompt_size):
    """Host-side constants for the fused forward / inverse DFT matmuls."""
    S = prompt_size
    assert S * S <= _AMP_PAD

    def dft(n):
        k = np.arange(n)
        return np.exp(-2j * np.pi * np.outer(k, k) / n)

    # For a row-major flattened plane x (length H*W): fft2(x) == x @ Op with
    # Op = kron(F_H, F_W) (the DFT matrices are symmetric).
    op = np.kron(dft(H), dft(W))
    op_re, op_im = op.real, op.imag

    # Column gather realising fftshift + spatial crop of the amplitude:
    # output column (i*S + j) is the un-shifted spectrum element that lands
    # at fftshifted coordinates (padding_size+i, padding_size+j).
    cols = [((padding_size + i - H // 2) % H) * W
            + ((padding_size + j - W // 2) % W)
            for i in range(S) for j in range(S)]
    amp_re = np.zeros((H * W, _AMP_PAD))
    amp_im = np.zeros((H * W, _AMP_PAD))
    amp_re[:, :S * S] = op_re[:, cols]
    amp_im[:, :S * S] = op_im[:, cols]

    # Fused forward operator: one dot -> [y_re | y_im | a_re | a_im].
    fwd = np.concatenate([op_re, op_im, amp_re, amp_im], axis=1)
    # Fused inverse operator: Re[ifft2(v)] == [v_re | v_im] @ [op_re; op_im]
    # / (H*W); the 1/(H*W) scale is folded into the prompt constant.
    inv = np.concatenate([op_re, op_im], axis=0)
    return fwd.astype(np.float32), inv.astype(np.float32)


def _prompt_kernel(x_ref, prm_ref, fwd_ref, inv_ref, src_ref, amp_ref, *, hw):
    x = x_ref[...]                                        # (bm, HW) f32
    # Single forward weight pass: DFT (real/imag) + fftshift-cropped columns.
    y = jnp.dot(x, fwd_ref[...], preferred_element_type=jnp.float32)

    y_re = y[:, :hw]
    y_im = y[:, hw:2 * hw]
    a_re = y[:, 2 * hw:2 * hw + _AMP_PAD]
    a_im = y[:, 2 * hw + _AMP_PAD:]

    # amp_low (fftshift-cropped amplitude); lane-dense (bm, 128) store.
    amp_ref[...] = jnp.sqrt(a_re * a_re + a_im * a_im)

    # cos(angle(y))*|y|*p == y_re*p and sin(angle(y))*|y|*p == y_im*p exactly
    # (including |y| == 0), so torch's abs/angle -> cos/sin reconstruction is
    # an elementwise scale.  One K=2*HW dot replaces two inverse dots + add.
    prm = prm_ref[...]
    v = jnp.concatenate([y_re * prm, y_im * prm], axis=1)  # (bm, 2*HW)
    src_ref[...] = jnp.dot(v, inv_ref[...], preferred_element_type=jnp.float32)


def _num_grid_splits():
    """2 grid halves only where a second TensorCore exists (v7x); else 1."""
    try:
        kind = jax.devices()[0].device_kind.lower()
    except Exception:
        kind = ""
    return 2 if "v7" in kind else 1


@functools.partial(jax.jit, static_argnums=(2, 3))
def prompt_forward(x, data_prompt, prompt_size, padding_size):
    B, C, H, W = x.shape
    S, ps = prompt_size, padding_size
    HW = H * W
    BC = B * C

    # The fused-Kronecker DFT path keeps both (HW, ~3*HW) operators resident
    # (double-buffered) in VMEM; cap HW so that fits every generation
    # (v7x: 64 MiB physical / 32 MiB default scoped VMEM).
    # TODO(synk): for image_size >= 32 switch to separable per-axis DFT
    # matmuls with K-tiling + VMEM accumulator instead of the (HW)^2 operator.
    assert HW % 128 == 0 and HW <= 512, (
        "fused Kronecker DFT path requires HW % 128 == 0 and HW <= 512")
    assert S * S <= _AMP_PAD

    # Learned prompt padded to (1, C, H, W) with 1.0 (torch F.pad), then
    # ifftshifted over (C, H, W).  torch fftshift/ifftshift default to ALL
    # axes; the pair cancels on amp and the batch roll is a no-op on the
    # size-1 prompt batch dim, leaving amp * ifftshift_(c,h,w)(prompt).
    # The ifft2 1/(H*W) scale is folded into this tiny constant.
    prompt_pad = jnp.pad(
        data_prompt,
        ((0, 0), (0, 0), (ps, H - ps - S), (ps, W - ps - S)),
        constant_values=1.0)
    prompt_eff = jnp.roll(prompt_pad, (-(C // 2), -(H // 2), -(W // 2)),
                          axis=(1, 2, 3)).astype(jnp.float32) * (1.0 / HW)
    # TODO(synk): for large B pass this as (C, HW) and replicate in-kernel to
    # avoid B x HBM traffic; at B=2 the duplicated slab is only ~6 KiB.
    prm = jnp.broadcast_to(
        prompt_eff.reshape(prompt_eff.shape[0], C, HW), (B, C, HW)
    ).reshape(BC, HW)

    x_flat = x.reshape(BC, HW).astype(jnp.float32)

    # Generation-aware megacore split: two parallel halves on v7x (pad BC to
    # a multiple of 16 so each half is (>=8, HW) and (8,128)-tileable; pad
    # rows are ~free in these fill-dominated matmuls); one step on v5e/v6e.
    nb = _num_grid_splits()
    bc_pad = ((BC + 15) // 16) * 16 if nb == 2 else BC
    if bc_pad != BC:
        x_flat = jnp.pad(x_flat, ((0, bc_pad - BC), (0, 0)))
        prm = jnp.pad(prm, ((0, bc_pad - BC), (0, 0)))
    bm = bc_pad // nb

    fwd_np, inv_np = _build_operators(H, W, ps, S)
    fwd_op = jnp.asarray(fwd_np)            # (HW, 2*HW + 2*_AMP_PAD)
    inv_op = jnp.asarray(inv_np)            # (2*HW, HW)

    kernel = functools.partial(_prompt_kernel, hw=HW)

    # NOTE: the operator in_specs are grid-constant; at larger HW they should
    # be single-buffered (pipeline_mode=pl.Buffered(1)).  At HW <= 512 the
    # double-buffered constants sit comfortably under the explicit limit.
    src_flat, amp_flat = pl.pallas_call(
        kernel,
        out_shape=(jax.ShapeDtypeStruct((bc_pad, HW), jnp.float32),
                   jax.ShapeDtypeStruct((bc_pad, _AMP_PAD), jnp.float32)),
        grid=(nb,),
        in_specs=[
            pl.BlockSpec((bm, HW), lambda i: (i, 0)),         # x planes
            pl.BlockSpec((bm, HW), lambda i: (i, 0)),         # prompt planes
            pl.BlockSpec(fwd_op.shape, lambda i: (0, 0)),     # fused fwd DFT
            pl.BlockSpec(inv_op.shape, lambda i: (0, 0)),     # fused inv DFT
        ],
        out_specs=(pl.BlockSpec((bm, HW), lambda i: (i, 0)),
                   pl.BlockSpec((bm, _AMP_PAD), lambda i: (i, 0))),
        compiler_params=pltpu.CompilerParams(
            dimension_semantics=("parallel",),
            vmem_limit_bytes=32 * 1024 * 1024),
    )(x_flat, prm, fwd_op, inv_op)

    src = src_flat[:BC].reshape(B, C, H, W)
    # Finish torch's all-axes fftshift for amp_low: the batch/channel roll
    # commutes with the spatial crop, so apply it to the tiny cropped output.
    amp_low = jnp.roll(amp_flat[:BC, :S * S].reshape(B, C, S, S),
                       (B // 2, C // 2), axis=(0, 1))
    return src, amp_low


def prompt_ref(x, data_prompt, prompt_size, padding_size):
    """Pure-JAX reference mirroring the PyTorch forward exactly."""
    _, _, H, W = x.shape
    fft = jnp.fft.fft2(x, axes=(-2, -1))
    amp, pha = jnp.abs(fft), jnp.angle(fft)
    amp_s = jnp.fft.fftshift(amp)                      # all axes (torch default)
    prompt_pad = jnp.pad(
        data_prompt,
        ((0, 0), (0, 0),
         (padding_size, H - padding_size - prompt_size),
         (padding_size, W - padding_size - prompt_size)),
        constant_values=1.0)
    amp_ = jnp.fft.ifftshift(amp_s * prompt_pad)       # all axes
    amp_low = amp_s[:, :, padding_size:padding_size + prompt_size,
                          padding_size:padding_size + prompt_size]
    real = jnp.cos(pha) * amp_
    imag = jnp.sin(pha) * amp_
    src = jnp.real(jnp.fft.ifft2(real + 1j * imag, axes=(-2, -1)))
    return src, amp_low


if __name__ == "__main__":
    # Small config consistent with the module: image_size=16, prompt_alpha
    # such that the prompt window is non-degenerate (prompt_size=4, pad=6).
    image_size, prompt_alpha, batch_size = 16, 0.3, 1
    prompt_size = max(int(image_size * prompt_alpha), 1)
    padding_size = (image_size - prompt_size) // 2

    key = jax.random.PRNGKey(0)
    kx, kp = jax.random.split(key)
    x = jax.random.normal(kx, (2, 3, image_size, image_size), jnp.float32)
    # nn.Parameter init in the module is all-ones; use a deterministic
    # non-trivial init so the prompt-multiply path is actually exercised.
    data_prompt = jax.random.uniform(
        kp, (batch_size, 3, prompt_size, prompt_size), jnp.float32, 0.5, 1.5)

    src, amp_low = prompt_forward(x, data_prompt, prompt_size, padding_size)
    jax.block_until_ready((src, amp_low))

    src_r, amp_low_r = prompt_ref(x, data_prompt, prompt_size, padding_size)
    for name, out, ref in (("src_in_trg", src, src_r),
                           ("amp_low", amp_low, amp_low_r)):
        err = float(jnp.max(jnp.abs(out - ref)))
        scale = float(jnp.max(jnp.abs(ref))) + 1e-6
        assert err / scale < 2e-2, f"{name} mismatch: rel err {err / scale:.3e}"

    print("KERNEL_OK")
</pallas_src>

<mosaic_0001>
module attributes {stable_mosaic.version = 11 : i64} {
  func.func @_prompt_kernel(%arg0: i32, %arg1: memref<6x256xf32, #tpu.memory_space<vmem>>, %arg2: memref<6x256xf32, #tpu.memory_space<vmem>>, %arg3: memref<256x768xf32, #tpu.memory_space<vmem>>, %arg4: memref<512x256xf32, #tpu.memory_space<vmem>>, %arg5: memref<6x256xf32, #tpu.memory_space<vmem>>, %arg6: memref<6x128xf32, #tpu.memory_space<vmem>>) attributes {dimension_semantics = [#tpu.dimension_semantics<parallel>], iteration_bounds = array<i64: 1>, scalar_prefetch = 0 : i64, scratch_operands = 0 : i64, tpu.core_type = #tpu.core_type<tc>, window_params = [{transform_indices = @transform_0, window_bounds = array<i64: 6, 256>}, {transform_indices = @transform_1, window_bounds = array<i64: 6, 256>}, {pipeline_mode = #tpu.pipeline_mode<synchronous>, transform_indices = @transform_2, window_bounds = array<i64: 256, 768>}, {pipeline_mode = #tpu.pipeline_mode<synchronous>, transform_indices = @transform_3, window_bounds = array<i64: 512, 256>}, {transform_indices = @transform_4, window_bounds = array<i64: 6, 256>}, {transform_indices = @transform_5, window_bounds = array<i64: 6, 128>}]} {
    %c0 = arith.constant 0 : index
    %c0_0 = arith.constant 0 : index
    %0 = vector.load %arg1[%c0, %c0_0] : memref<6x256xf32, #tpu.memory_space<vmem>>, vector<6x256xf32>
    %c0_1 = arith.constant 0 : index
    %c0_2 = arith.constant 0 : index
    %1 = vector.load %arg3[%c0_1, %c0_2] : memref<256x768xf32, #tpu.memory_space<vmem>>, vector<256x768xf32>
    %cst = arith.constant dense<0.000000e+00> : vector<6x768xf32>
    %2 = tpu.matmul %0, %1, %cst {dimension_numbers = #tpu.dot_dimension_numbers<[1], [0], [0], [1], [0, 0, 1, 1], [], []>} : vector<6x256xf32>, vector<256x768xf32>, vector<6x768xf32> -> vector<6x768xf32>
    %3 = vector.extract_strided_slice %2 {offsets = [0, 0], sizes = [6, 256], strides = [1, 1]} : vector<6x768xf32> to vector<6x256xf32>
    %4 = vector.extract_strided_slice %2 {offsets = [0, 256], sizes = [6, 256], strides = [1, 1]} : vector<6x768xf32> to vector<6x256xf32>
    %5 = vector.extract_strided_slice %2 {offsets = [0, 512], sizes = [6, 128], strides = [1, 1]} : vector<6x768xf32> to vector<6x128xf32>
    %6 = vector.extract_strided_slice %2 {offsets = [0, 640], sizes = [6, 128], strides = [1, 1]} : vector<6x768xf32> to vector<6x128xf32>
    %7 = arith.mulf %5, %5 : vector<6x128xf32>
    %8 = arith.mulf %6, %6 : vector<6x128xf32>
    %9 = arith.addf %7, %8 : vector<6x128xf32>
    %10 = math.sqrt %9 : vector<6x128xf32>
    %c0_3 = arith.constant 0 : index
    %c0_4 = arith.constant 0 : index
    %11 = vector.load %arg6[%c0_3, %c0_4] : memref<6x128xf32, #tpu.memory_space<vmem>>, vector<6x128xf32>
    tpu.vector_store %arg6[%c0_3, %c0_4], %10 {strides = array<i32>} : memref<6x128xf32, #tpu.memory_space<vmem>>, vector<6x128xf32>,
    %c0_5 = arith.constant 0 : index
    %c0_6 = arith.constant 0 : index
    %12 = vector.load %arg2[%c0_5, %c0_6] : memref<6x256xf32, #tpu.memory_space<vmem>>, vector<6x256xf32>
    %13 = arith.mulf %3, %12 : vector<6x256xf32>
    %14 = arith.mulf %4, %12 : vector<6x256xf32>
    %15 = tpu.concatenate %13, %14 in 1 : vector<6x256xf32>, vector<6x256xf32> -> vector<6x512xf32>
    %c0_7 = arith.constant 0 : index
    %c0_8 = arith.constant 0 : index
    %16 = vector.load %arg4[%c0_7, %c0_8] : memref<512x256xf32, #tpu.memory_space<vmem>>, vector<512x256xf32>
    %cst_9 = arith.constant dense<0.000000e+00> : vector<6x256xf32>
    %17 = tpu.matmul %15, %16, %cst_9 {dimension_numbers = #tpu.dot_dimension_numbers<[1], [0], [0], [1], [0, 0, 1, 1], [], []>} : vector<6x512xf32>, vector<512x256xf32>, vector<6x256xf32> -> vector<6x256xf32>
    %c0_10 = arith.constant 0 : index
    %c0_11 = arith.constant 0 : index
    %18 = vector.load %arg5[%c0_10, %c0_11] : memref<6x256xf32, #tpu.memory_space<vmem>>, vector<6x256xf32>
    tpu.vector_store %arg5[%c0_10, %c0_11], %17 {strides = array<i32>} : memref<6x256xf32, #tpu.memory_space<vmem>>, vector<6x256xf32>,
    return
  }
  func.func @transform_0(%arg0: i32) -> (i32, i32) {
    %c0_i32 = arith.constant 0 : i32
    %c0_i32_0 = arith.constant 0 : i32
    return %arg0, %c0_i32 : i32, i32
  }
  func.func @transform_1(%arg0: i32) -> (i32, i32) {
    %c0_i32 = arith.constant 0 : i32
    %c0_i32_0 = arith.constant 0 : i32
    return %arg0, %c0_i32 : i32, i32
  }
  func.func @transform_2(%arg0: i32) -> (i32, i32) {
    %c0_i32 = arith.constant 0 : i32
    %c0_i32_0 = arith.constant 0 : i32
    %c0_i32_1 = arith.constant 0 : i32
    return %c0_i32, %c0_i32_0 : i32, i32
  }
  func.func @transform_3(%arg0: i32) -> (i32, i32) {
    %c0_i32 = arith.constant 0 : i32
    %c0_i32_0 = arith.constant 0 : i32
    %c0_i32_1 = arith.constant 0 : i32
    return %c0_i32, %c0_i32_0 : i32, i32
  }
  func.func @transform_4(%arg0: i32) -> (i32, i32) {
    %c0_i32 = arith.constant 0 : i32
    %c0_i32_0 = arith.constant 0 : i32
    return %arg0, %c0_i32 : i32, i32
  }
  func.func @transform_5(%arg0: i32) -> (i32, i32) {
    %c0_i32 = arith.constant 0 : i32
    %c0_i32_0 = arith.constant 0 : i32
    return %arg0, %c0_i32 : i32, i32
  }
}

</mosaic_0001>

<llo_original>
// kernel: prompt_forward.1
$region0: #{prompt_forward.1}
  #allocation0 [shape = 'u32[]', space=smem, size = 0x4, offset = 0x4, fixed_abs, tag = 'smem constant byte address 0x4 - core index']
  #allocation1 [shape = 'u32[144,128]{1,0:T(1,128)}', space=vmem, size = 0x12000, scoped, tag = 'internal scratch']
  %s0 = inlined_call_operand.vmem [shape: f32[6,256], index: 0, kind: input, shape index: {}]
  %s1 = inlined_call_operand.vmem [shape: f32[6,256], index: 1, kind: input, shape index: {}]
  %s2 = inlined_call_operand.hbm [shape: f32[256,768], index: 2, kind: input, shape index: {}]
  %s3 = inlined_call_operand.hbm [shape: f32[512,256], index: 3, kind: input, shape index: {}]
  %s4 = inlined_call_operand.vmem [shape: f32[6,256], index: 4, kind: output, shape index: {0}]
  %s5 = inlined_call_operand.vmem [shape: f32[6,128], index: 5, kind: output, shape index: {1}]
  %6 = xla_tuple %s4, %s5
  %s7 = sld [smem:[#allocation0]]
  $region42: #{prompt_forward.1} parent=0
    _
  %s9 = ssub.s32 1, %s7
  %s10 = scalar_select 0, %s9, %s7
  $region1: #{prompt_forward.1} parent=0
    #allocation2 [shape = 'u8[786432]{0}', space=vmem, size = 0xc0000, scoped, tag = 'input window, operand 2, single buffered']
    #allocation3 [shape = 's32[1]{0}', space=sflag, size = 0x4, scoped, tag = 'scoped memory for prompt_forward.1']
    #allocation4 [shape = 'u8[524288]{0}', space=vmem, size = 0x80000, scoped, tag = 'input window, operand 3, single buffered']
    #allocation5 [shape = 's32[1]{0}', space=sflag, size = 0x4, scoped, tag = 'scoped memory for prompt_forward.1']
    %11 = vsyncpa [#allocation3], 0
    %12 = vsyncpa [#allocation5], 0
    // Predicated region
    $region2: #{prompt_forward.1} parent=1 // pred_check
      _
    $region3: #{prompt_forward.1} parent=1 // pred_check_branch
      %14 = sbr.rel (0) target = $region5
    $region4: #{prompt_forward.1} parent=1 // pred_region
      _
    $region5: #{prompt_forward.1} parent=1 // pred_fallthru
      _
    // Predicated region
    $region6: #{prompt_forward.1} parent=1 // pred_check
      _
    $region7: #{prompt_forward.1} parent=1 // pred_check_branch
      %16 = sbr.rel (0) target = $region9
    $region8: #{prompt_forward.1} parent=1 // pred_region
      _
    $region9: #{prompt_forward.1} parent=1 // pred_fallthru
      _
    // Predicated region
    $region10: #{prompt_forward.1} parent=1 // pred_check
      _
    $region11: #{prompt_forward.1} parent=1 // pred_check_branch
      %18 = sbr.rel (0) target = $region13
    $region12: #{prompt_forward.1} parent=1 // pred_region
      %s20 = ssub.s32 24576, 24576
      %21 = vsyncadd [#allocation3], %s20
      %s22 = sshll.u32 [#allocation2], 4
      %s23 = int_to_ptr.vmem [resolvable:$true] %s22
      %28 = dma.hbm_to_vmem [thread:$0]  %s2, 24576, %s23, [#allocation3], 768, 768, 48
    $region13: #{prompt_forward.1} parent=1 // pred_fallthru
      _
    // Predicated region
    $region14: #{prompt_forward.1} parent=1 // pred_check
      _
    $region15: #{prompt_forward.1} parent=1 // pred_check_branch
      %30 = sbr.rel (0) target = $region17
    $region16: #{prompt_forward.1} parent=1 // pred_region
      %s32 = ssub.s32 16384, 16384
      %33 = vsyncadd [#allocation5], %s32
      %s34 = sshll.u32 [#allocation4], 4
      %s35 = int_to_ptr.vmem [resolvable:$true] %s34
      %40 = dma.hbm_to_vmem [thread:$0]  %s3, 16384, %s35, [#allocation5], 256, 256, 16
    $region17: #{prompt_forward.1} parent=1 // pred_fallthru
      _
    // Predicated region
    $region18: #{prompt_forward.1} parent=1 // pred_check
      _
    $region19: #{prompt_forward.1} parent=1 // pred_check_branch
      %42 = sbr.rel (0) target = $region21
    $region20: #{prompt_forward.1} parent=1 // pred_region
      %43 = dma.done [#allocation3], 24576
    $region21: #{prompt_forward.1} parent=1 // pred_fallthru
      _
    // Predicated region
    $region22: #{prompt_forward.1} parent=1 // pred_check
      _
    $region23: #{prompt_forward.1} parent=1 // pred_check_branch
      %45 = sbr.rel (0) target = $region25
    $region24: #{prompt_forward.1} parent=1 // pred_region
      %46 = dma.done [#allocation5], 16384
    $region25: #{prompt_forward.1} parent=1 // pred_fallthru
      _
    %v47 = vld [vmem:[%s0] sm:$0x3f]
    %v48 = vld [vmem:[%s0 + $0x8] sm:$0x3f]
    %v49 = vld [vmem:[#allocation2] sm:$0xff]
    %v50 = vld [vmem:[#allocation2 + $0x8] sm:$0xff]
    %v51 = vld [vmem:[#allocation2 + $0x10] sm:$0xff]
    %v52 = vld [vmem:[#allocation2 + $0x18] sm:$0xff]
    %v53 = vld [vmem:[#allocation2 + $0x20] sm:$0xff]
    %v54 = vld [vmem:[#allocation2 + $0x28] sm:$0xff]
    %v55 = vld [vmem:[#allocation2 + $0x30] sm:$0xff]
    %v56 = vld [vmem:[#allocation2 + $0x38] sm:$0xff]
    %v57 = vld [vmem:[#allocation2 + $0x40] sm:$0xff]
    %v58 = vld [vmem:[#allocation2 + $0x48] sm:$0xff]
    %v59 = vld [vmem:[#allocation2 + $0x50] sm:$0xff]
    %v60 = vld [vmem:[#allocation2 + $0x58] sm:$0xff]
    %v61 = vld [vmem:[#allocation2 + $0x60] sm:$0xff]
    %v62 = vld [vmem:[#allocation2 + $0x68] sm:$0xff]
    %v63 = vld [vmem:[#allocation2 + $0x70] sm:$0xff]
    %v64 = vld [vmem:[#allocation2 + $0x78] sm:$0xff]
    %v65 = vld [vmem:[#allocation2 + $0x80] sm:$0xff]
    %v66 = vld [vmem:[#allocation2 + $0x88] sm:$0xff]
    %v67 = vld [vmem:[#allocation2 + $0x90] sm:$0xff]
    %v68 = vld [vmem:[#allocation2 + $0x98] sm:$0xff]
    %v69 = vld [vmem:[#allocation2 + $0xa0] sm:$0xff]
    %v70 = vld [vmem:[#allocation2 + $0xa8] sm:$0xff]
    %v71 = vld [vmem:[#allocation2 + $0xb0] sm:$0xff]
    %v72 = vld [vmem:[#allocation2 + $0xb8] sm:$0xff]
    %v73 = vld [vmem:[#allocation2 + $0xc0] sm:$0xff]
    %v74 = vld [vmem:[#allocation2 + $0xc8] sm:$0xff]
    %v75 = vld [vmem:[#allocation2 + $0xd0] sm:$0xff]
    %v76 = vld [vmem:[#allocation2 + $0xd8] sm:$0xff]
    %v77 = vld [vmem:[#allocation2 + $0xe0] sm:$0xff]
    %v78 = vld [vmem:[#allocation2 + $0xe8] sm:$0xff]
    %v79 = vld [vmem:[#allocation2 + $0xf0] sm:$0xff]
    %v80 = vld [vmem:[#allocation2 + $0xf8] sm:$0xff]
    %v81 = vld [vmem:[#allocation2 + $0x100] sm:$0xff]
    %v82 = vld [vmem:[#allocation2 + $0x108] sm:$0xff]
    %v83 = vld [vmem:[#allocation2 + $0x110] sm:$0xff]
    %v84 = vld [vmem:[#allocation2 + $0x118] sm:$0xff]
    %v85 = vld [vmem:[#allocation2 + $0x120] sm:$0xff]
    %v86 = vld [vmem:[#allocation2 + $0x128] sm:$0xff]
    %v87 = vld [vmem:[#allocation2 + $0x130] sm:$0xff]
    %v88 = vld [vmem:[#allocation2 + $0x138] sm:$0xff]
    %v89 = vld [vmem:[#allocation2 + $0x140] sm:$0xff]
    %v90 = vld [vmem:[#allocation2 + $0x148] sm:$0xff]
    %v91 = vld [vmem:[#allocation2 + $0x150] sm:$0xff]
    %v92 = vld [vmem:[#allocation2 + $0x158] sm:$0xff]
    %v93 = vld [vmem:[#allocation2 + $0x160] sm:$0xff]
    %v94 = vld [vmem:[#allocation2 + $0x168] sm:$0xff]
    %v95 = vld [vmem:[#allocation2 + $0x170] sm:$0xff]
    %v96 = vld [vmem:[#allocation2 + $0x178] sm:$0xff]
    %v97 = vld [vmem:[#allocation2 + $0x180] sm:$0xff]
    %v98 = vld [vmem:[#allocation2 + $0x188] sm:$0xff]
    %v99 = vld [vmem:[#allocation2 + $0x190] sm:$0xff]
    %v100 = vld [vmem:[#allocation2 + $0x198] sm:$0xff]
    %v101 = vld [vmem:[#allocation2 + $0x1a0] sm:$0xff]
    %v102 = vld [vmem:[#allocation2 + $0x1a8] sm:$0xff]
    %v103 = vld [vmem:[#allocation2 + $0x1b0] sm:$0xff]
    %v104 = vld [vmem:[#allocation2 + $0x1b8] sm:$0xff]
    %v105 = vld [vmem:[#allocation2 + $0x1c0] sm:$0xff]
    %v106 = vld [vmem:[#allocation2 + $0x1c8] sm:$0xff]
    %v107 = vld [vmem:[#allocation2 + $0x1d0] sm:$0xff]
    %v108 = vld [vmem:[#allocation2 + $0x1d8] sm:$0xff]
    %v109 = vld [vmem:[#allocation2 + $0x1e0] sm:$0xff]
    %v110 = vld [vmem:[#allocation2 + $0x1e8] sm:$0xff]
    %v111 = vld [vmem:[#allocation2 + $0x1f0] sm:$0xff]
    %v112 = vld [vmem:[#allocation2 + $0x1f8] sm:$0xff]
    %v113 = vld [vmem:[#allocation2 + $0x200] sm:$0xff]
    %v114 = vld [vmem:[#allocation2 + $0x208] sm:$0xff]
    %v115 = vld [vmem:[#allocation2 + $0x210] sm:$0xff]
    %v116 = vld [vmem:[#allocation2 + $0x218] sm:$0xff]
    %v117 = vld [vmem:[#allocation2 + $0x220] sm:$0xff]
    %v118 = vld [vmem:[#allocation2 + $0x228] sm:$0xff]
    %v119 = vld [vmem:[#allocation2 + $0x230] sm:$0xff]
    %v120 = vld [vmem:[#allocation2 + $0x238] sm:$0xff]
    %v121 = vld [vmem:[#allocation2 + $0x240] sm:$0xff]
    %v122 = vld [vmem:[#allocation2 + $0x248] sm:$0xff]
    %v123 = vld [vmem:[#allocation2 + $0x250] sm:$0xff]
    %v124 = vld [vmem:[#allocation2 + $0x258] sm:$0xff]
    %v125 = vld [vmem:[#allocation2 + $0x260] sm:$0xff]
    %v126 = vld [vmem:[#allocation2 + $0x268] sm:$0xff]
    %v127 = vld [vmem:[#allocation2 + $0x270] sm:$0xff]
    %v128 = vld [vmem:[#allocation2 + $0x278] sm:$0xff]
    %v129 = vld [vmem:[#allocation2 + $0x280] sm:$0xff]
    %v130 = vld [vmem:[#allocation2 + $0x288] sm:$0xff]
    %v131 = vld [vmem:[#allocation2 + $0x290] sm:$0xff]
    %v132 = vld [vmem:[#allocation2 + $0x298] sm:$0xff]
    %v133 = vld [vmem:[#allocation2 + $0x2a0] sm:$0xff]
    %v134 = vld [vmem:[#allocation2 + $0x2a8] sm:$0xff]
    %v135 = vld [vmem:[#allocation2 + $0x2b0] sm:$0xff]
    %v136 = vld [vmem:[#allocation2 + $0x2b8] sm:$0xff]
    %v137 = vld [vmem:[#allocation2 + $0x2c0] sm:$0xff]
    %v138 = vld [vmem:[#allocation2 + $0x2c8] sm:$0xff]
    %v139 = vld [vmem:[#allocation2 + $0x2d0] sm:$0xff]
    %v140 = vld [vmem:[#allocation2 + $0x2d8] sm:$0xff]
    %v141 = vld [vmem:[#allocation2 + $0x2e0] sm:$0xff]
    %v142 = vld [vmem:[#allocation2 + $0x2e8] sm:$0xff]
    %v143 = vld [vmem:[#allocation2 + $0x2f0] sm:$0xff]
    %v144 = vld [vmem:[#allocation2 + $0x2f8] sm:$0xff]
    %v145 = vld [vmem:[#allocation2 + $0x300] sm:$0xff]
    %v146 = vld [vmem:[#allocation2 + $0x308] sm:$0xff]
    %v147 = vld [vmem:[#allocation2 + $0x310] sm:$0xff]
    %v148 = vld [vmem:[#allocation2 + $0x318] sm:$0xff]
    %v149 = vld [vmem:[#allocation2 + $0x320] sm:$0xff]
    %v150 = vld [vmem:[#allocation2 + $0x328] sm:$0xff]
    %v151 = vld [vmem:[#allocation2 + $0x330] sm:$0xff]
    %v152 = vld [vmem:[#allocation2 + $0x338] sm:$0xff]
    %v153 = vld [vmem:[#allocation2 + $0x340] sm:$0xff]
    %v154 = vld [vmem:[#allocation2 + $0x348] sm:$0xff]
    %v155 = vld [vmem:[#allocation2 + $0x350] sm:$0xff]
    %v156 = vld [vmem:[#allocation2 + $0x358] sm:$0xff]
    %v157 = vld [vmem:[#allocation2 + $0x360] sm:$0xff]
    %v158 = vld [vmem:[#allocation2 + $0x368] sm:$0xff]
    %v159 = vld [vmem:[#allocation2 + $0x370] sm:$0xff]
    %v160 = vld [vmem:[#allocation2 + $0x378] sm:$0xff]
    %v161 = vld [vmem:[#allocation2 + $0x380] sm:$0xff]
    %v162 = vld [vmem:[#allocation2 + $0x388] sm:$0xff]
    %v163 = vld [vmem:[#allocation2 + $0x390] sm:$0xff]
    %v164 = vld [vmem:[#allocation2 + $0x398] sm:$0xff]
    %v165 = vld [vmem:[#allocation2 + $0x3a0] sm:$0xff]
    %v166 = vld [vmem:[#allocation2 + $0x3a8] sm:$0xff]
    %v167 = vld [vmem:[#allocation2 + $0x3b0] sm:$0xff]
    %v168 = vld [vmem:[#allocation2 + $0x3b8] sm:$0xff]
    %v169 = vld [vmem:[#allocation2 + $0x3c0] sm:$0xff]
    %v170 = vld [vmem:[#allocation2 + $0x3c8] sm:$0xff]
    %v171 = vld [vmem:[#allocation2 + $0x3d0] sm:$0xff]
    %v172 = vld [vmem:[#allocation2 + $0x3d8] sm:$0xff]
    %v173 = vld [vmem:[#allocation2 + $0x3e0] sm:$0xff]
    %v174 = vld [vmem:[#allocation2 + $0x3e8] sm:$0xff]
    %v175 = vld [vmem:[#allocation2 + $0x3f0] sm:$0xff]
    %v176 = vld [vmem:[#allocation2 + $0x3f8] sm:$0xff]
    %v177 = vld [vmem:[#allocation2 + $0x400] sm:$0xff]
    %v178 = vld [vmem:[#allocation2 + $0x408] sm:$0xff]
    %v179 = vld [vmem:[#allocation2 + $0x410] sm:$0xff]
    %v180 = vld [vmem:[#allocation2 + $0x418] sm:$0xff]
    %v181 = vld [vmem:[#allocation2 + $0x420] sm:$0xff]
    %v182 = vld [vmem:[#allocation2 + $0x428] sm:$0xff]
    %v183 = vld [vmem:[#allocation2 + $0x430] sm:$0xff]
    %v184 = vld [vmem:[#allocation2 + $0x438] sm:$0xff]
    %v185 = vld [vmem:[#allocation2 + $0x440] sm:$0xff]
    %v186 = vld [vmem:[#allocation2 + $0x448] sm:$0xff]
    %v187 = vld [vmem:[#allocation2 + $0x450] sm:$0xff]
    %v188 = vld [vmem:[#allocation2 + $0x458] sm:$0xff]
    %v189 = vld [vmem:[#allocation2 + $0x460] sm:$0xff]
    %v190 = vld [vmem:[#allocation2 + $0x468] sm:$0xff]
    %v191 = vld [vmem:[#allocation2 + $0x470] sm:$0xff]
    %v192 = vld [vmem:[#allocation2 + $0x478] sm:$0xff]
    %v193 = vld [vmem:[#allocation2 + $0x480] sm:$0xff]
    %v194 = vld [vmem:[#allocation2 + $0x488] sm:$0xff]
    %v195 = vld [vmem:[#allocation2 + $0x490] sm:$0xff]
    %v196 = vld [vmem:[#allocation2 + $0x498] sm:$0xff]
    %v197 = vld [vmem:[#allocation2 + $0x4a0] sm:$0xff]
    %v198 = vld [vmem:[#allocation2 + $0x4a8] sm:$0xff]
    %v199 = vld [vmem:[#allocation2 + $0x4b0] sm:$0xff]
    %v200 = vld [vmem:[#allocation2 + $0x4b8] sm:$0xff]
    %v201 = vld [vmem:[#allocation2 + $0x4c0] sm:$0xff]
    %v202 = vld [vmem:[#allocation2 + $0x4c8] sm:$0xff]
    %v203 = vld [vmem:[#allocation2 + $0x4d0] sm:$0xff]
    %v204 = vld [vmem:[#allocation2 + $0x4d8] sm:$0xff]
    %v205 = vld [vmem:[#allocation2 + $0x4e0] sm:$0xff]
    %v206 = vld [vmem:[#allocation2 + $0x4e8] sm:$0xff]
    %v207 = vld [vmem:[#allocation2 + $0x4f0] sm:$0xff]
    %v208 = vld [vmem:[#allocation2 + $0x4f8] sm:$0xff]
    %v209 = vld [vmem:[#allocation2 + $0x500] sm:$0xff]
    %v210 = vld [vmem:[#allocation2 + $0x508] sm:$0xff]
    %v211 = vld [vmem:[#allocation2 + $0x510] sm:$0xff]
    %v212 = vld [vmem:[#allocation2 + $0x518] sm:$0xff]
    %v213 = vld [vmem:[#allocation2 + $0x520] sm:$0xff]
    %v214 = vld [vmem:[#allocation2 + $0x528] sm:$0xff]
    %v215 = vld [vmem:[#allocation2 + $0x530] sm:$0xff]
    %v216 = vld [vmem:[#allocation2 + $0x538] sm:$0xff]
    %v217 = vld [vmem:[#allocation2 + $0x540] sm:$0xff]
    %v218 = vld [vmem:[#allocation2 + $0x548] sm:$0xff]
    %v219 = vld [vmem:[#allocation2 + $0x550] sm:$0xff]
    %v220 = vld [vmem:[#allocation2 + $0x558] sm:$0xff]
    %v221 = vld [vmem:[#allocation2 + $0x560] sm:$0xff]
    %v222 = vld [vmem:[#allocation2 + $0x568] sm:$0xff]
    %v223 = vld [vmem:[#allocation2 + $0x570] sm:$0xff]
    %v224 = vld [vmem:[#allocation2 + $0x578] sm:$0xff]
    %v225 = vld [vmem:[#allocation2 + $0x580] sm:$0xff]
    %v226 = vld [vmem:[#allocation2 + $0x588] sm:$0xff]
    %v227 = vld [vmem:[#allocation2 + $0x590] sm:$0xff]
    %v228 = vld [vmem:[#allocation2 + $0x598] sm:$0xff]
    %v229 = vld [vmem:[#allocation2 + $0x5a0] sm:$0xff]
    %v230 = vld [vmem:[#allocation2 + $0x5a8] sm:$0xff]
    %v231 = vld [vmem:[#allocation2 + $0x5b0] sm:$0xff]
    %v232 = vld [vmem:[#allocation2 + $0x5b8] sm:$0xff]
    %v233 = vld [vmem:[#allocation2 + $0x5c0] sm:$0xff]
    %v234 = vld [vmem:[#allocation2 + $0x5c8] sm:$0xff]
    %v235 = vld [vmem:[#allocation2 + $0x5d0] sm:$0xff]
    %v236 = vld [vmem:[#allocation2 + $0x5d8] sm:$0xff]
    %v237 = vld [vmem:[#allocation2 + $0x5e0] sm:$0xff]
    %v238 = vld [vmem:[#allocation2 + $0x5e8] sm:$0xff]
    %v239 = vld [vmem:[#allocation2 + $0x5f0] sm:$0xff]
    %v240 = vld [vmem:[#allocation2 + $0x5f8] sm:$0xff]
    %241 = vmatprep.subr.mxu0 %v50
    %242 = vmatpush1.msra.mxu0 %v49
    %243 = vmatprep.subr.mxu0 %v56
    %244 = vmatpush1.msra.mxu0 %v55
    %245 = vmatprep.subr.mxu0 %v62
    %246 = vmatpush1.msra.mxu0 %v61
    %247 = vmatprep.subr.mxu0 %v68
    %248 = vmatpush1.msra.mxu0 %v67
    %249 = vmatprep.subr.mxu0 %v74
    %250 = vmatpush1.msra.mxu0 %v73
    %251 = vmatprep.subr.mxu0 %v80
    %252 = vmatpush1.msra.mxu0 %v79
    %253 = vmatprep.subr.mxu0 %v86
    %254 = vmatpush1.msra.mxu0 %v85
    %255 = vmatprep.subr.mxu0 %v92
    %256 = vmatpush1.msra.mxu0 %v91
    %257 = vmatprep.subr.mxu0 %v98
    %258 = vmatpush1.msra.mxu0 %v97
    %259 = vmatprep.subr.mxu0 %v104
    %260 = vmatpush1.msra.mxu0 %v103
    %261 = vmatprep.subr.mxu0 %v110
    %262 = vmatpush1.msra.mxu0 %v109
    %263 = vmatprep.subr.mxu0 %v116
    %264 = vmatpush1.msra.mxu0 %v115
    %265 = vmatprep.subr.mxu0 %v122
    %266 = vmatpush1.msra.mxu0 %v121
    %267 = vmatprep.subr.mxu0 %v128
    %268 = vmatpush1.msra.mxu0 %v127
    %269 = vmatprep.subr.mxu0 %v134
    %270 = vmatpush1.msra.mxu0 %v133
    %271 = vmatprep.subr.mxu0 %v140
    %272 = vmatpush1.msra.mxu0 %v139
    %273 = vmatprep.subr.mxu0 %v146
    %274 = vmatpush1.msra.mxu0 %v145
    %275 = vmatprep.subr.mxu0 %v152
    %276 = vmatpush1.msra.mxu0 %v151
    %277 = vmatprep.subr.mxu0 %v158
    %278 = vmatpush1.msra.mxu0 %v157
    %279 = vmatprep.subr.mxu0 %v164
    %280 = vmatpush1.msra.mxu0 %v163
    %281 = vmatprep.subr.mxu0 %v170
    %282 = vmatpush1.msra.mxu0 %v169
    %283 = vmatprep.subr.mxu0 %v176
    %284 = vmatpush1.msra.mxu0 %v175
    %285 = vmatprep.subr.mxu0 %v182
    %286 = vmatpush1.msra.mxu0 %v181
    %287 = vmatprep.subr.mxu0 %v188
    %288 = vmatpush1.msra.mxu0 %v187
    %289 = vmatprep.subr.mxu0 %v194
    %290 = vmatpush1.msra.mxu0 %v193
    %291 = vmatprep.subr.mxu0 %v200
    %292 = vmatpush1.msra.mxu0 %v199
    %293 = vmatprep.subr.mxu0 %v206
    %294 = vmatpush1.msra.mxu0 %v205
    %295 = vmatprep.subr.mxu0 %v212
    %296 = vmatpush1.msra.mxu0 %v211
    %297 = vmatprep.subr.mxu0 %v218
    %298 = vmatpush1.msra.mxu0 %v217
    %299 = vmatprep.subr.mxu0 %v224
    %300 = vmatpush1.msra.mxu0 %v223
    %301 = vmatprep.subr.mxu0 %v230
    %302 = vmatpush1.msra.mxu0 %v229
    %303 = vmatprep.subr.mxu0 %v236
    %304 = vmatpush1.msra.mxu0 %v235
    %305 = vmatprep.mubr.f32.mxu0 %v48
    %306 = vmatmul.mubr.f32.gmra.mrb[0].mxu0 %v47
    %v307 = vpop.f32.mrb[0].mxu0
    %v308 = vadd.f32 0.0, %v307
    %v309 = vpop.f32.mrb[0].mxu0
    %v310 = vadd.f32 0.0, %v309
    %311 = vdwg.mxu0
    %312 = vmatprep.subr.mxu0 %v52
    %313 = vmatpush1.msra.mxu0 %v51
    %314 = vmatprep.subr.mxu0 %v58
    %315 = vmatpush1.msra.mxu0 %v57
    %316 = vmatprep.subr.mxu0 %v64
    %317 = vmatpush1.msra.mxu0 %v63
    %318 = vmatprep.subr.mxu0 %v70
    %319 = vmatpush1.msra.mxu0 %v69
    %320 = vmatprep.subr.mxu0 %v76
    %321 = vmatpush1.msra.mxu0 %v75
    %322 = vmatprep.subr.mxu0 %v82
    %323 = vmatpush1.msra.mxu0 %v81
    %324 = vmatprep.subr.mxu0 %v88
    %325 = vmatpush1.msra.mxu0 %v87
    %326 = vmatprep.subr.mxu0 %v94
    %327 = vmatpush1.msra.mxu0 %v93
    %328 = vmatprep.subr.mxu0 %v100
    %329 = vmatpush1.msra.mxu0 %v99
    %330 = vmatprep.subr.mxu0 %v106
    %331 = vmatpush1.msra.mxu0 %v105
    %332 = vmatprep.subr.mxu0 %v112
    %333 = vmatpush1.msra.mxu0 %v111
    %334 = vmatprep.subr.mxu0 %v118
    %335 = vmatpush1.msra.mxu0 %v117
    %336 = vmatprep.subr.mxu0 %v124
    %337 = vmatpush1.msra.mxu0 %v123
    %338 = vmatprep.subr.mxu0 %v130
    %339 = vmatpush1.msra.mxu0 %v129
    %340 = vmatprep.subr.mxu0 %v136
    %341 = vmatpush1.msra.mxu0 %v135
    %342 = vmatprep.subr.mxu0 %v142
    %343 = vmatpush1.msra.mxu0 %v141
    %344 = vmatprep.subr.mxu0 %v148
    %345 = vmatpush1.msra.mxu0 %v147
    %346 = vmatprep.subr.mxu0 %v154
    %347 = vmatpush1.msra.mxu0 %v153
    %348 = vmatprep.subr.mxu0 %v160
    %349 = vmatpush1.msra.mxu0 %v159
    %350 = vmatprep.subr.mxu0 %v166
    %351 = vmatpush1.msra.mxu0 %v165
    %352 = vmatprep.subr.mxu0 %v172
    %353 = vmatpush1.msra.mxu0 %v171
    %354 = vmatprep.subr.mxu0 %v178
    %355 = vmatpush1.msra.mxu0 %v177
    %356 = vmatprep.subr.mxu0 %v184
    %357 = vmatpush1.msra.mxu0 %v183
    %358 = vmatprep.subr.mxu0 %v190
    %359 = vmatpush1.msra.mxu0 %v189
    %360 = vmatprep.subr.mxu0 %v196
    %361 = vmatpush1.msra.mxu0 %v195
    %362 = vmatprep.subr.mxu0 %v202
    %363 = vmatpush1.msra.mxu0 %v201
    %364 = vmatprep.subr.mxu0 %v208
    %365 = vmatpush1.msra.mxu0 %v207
    %366 = vmatprep.subr.mxu0 %v214
    %367 = vmatpush1.msra.mxu0 %v213
    %368 = vmatprep.subr.mxu0 %v220
    %369 = vmatpush1.msra.mxu0 %v219
    %370 = vmatprep.subr.mxu0 %v226
    %371 = vmatpush1.msra.mxu0 %v225
    %372 = vmatprep.subr.mxu0 %v232
    %373 = vmatpush1.msra.mxu0 %v231
    %374 = vmatprep.subr.mxu0 %v238
    %375 = vmatpush1.msra.mxu0 %v237
    %376 = vmatprep.mubr.f32.mxu0 %v48
    %377 = vmatmul.mubr.f32.gmra.mrb[0].mxu0 %v47
    %v378 = vpop.f32.mrb[0].mxu0
    %v379 = vadd.f32 0.0, %v378
    %v380 = vpop.f32.mrb[0].mxu0
    %v381 = vadd.f32 0.0, %v380
    %382 = vdwg.mxu0
    %383 = vmatprep.subr.mxu0 %v54
    %384 = vmatpush1.msra.mxu0 %v53
    %385 = vmatprep.subr.mxu0 %v60
    %386 = vmatpush1.msra.mxu0 %v59
    %387 = vmatprep.subr.mxu0 %v66
    %388 = vmatpush1.msra.mxu0 %v65
    %389 = vmatprep.subr.mxu0 %v72
    %390 = vmatpush1.msra.mxu0 %v71
    %391 = vmatprep.subr.mxu0 %v78
    %392 = vmatpush1.msra.mxu0 %v77
    %393 = vmatprep.subr.mxu0 %v84
    %394 = vmatpush1.msra.mxu0 %v83
    %395 = vmatprep.subr.mxu0 %v90
    %396 = vmatpush1.msra.mxu0 %v89
    %397 = vmatprep.subr.mxu0 %v96
    %398 = vmatpush1.msra.mxu0 %v95
    %399 = vmatprep.subr.mxu0 %v102
    %400 = vmatpush1.msra.mxu0 %v101
    %401 = vmatprep.subr.mxu0 %v108
    %402 = vmatpush1.msra.mxu0 %v107
    %403 = vmatprep.subr.mxu0 %v114
    %404 = vmatpush1.msra.mxu0 %v113
    %405 = vmatprep.subr.mxu0 %v120
    %406 = vmatpush1.msra.mxu0 %v119
    %407 = vmatprep.subr.mxu0 %v126
    %408 = vmatpush1.msra.mxu0 %v125
    %409 = vmatprep.subr.mxu0 %v132
    %410 = vmatpush1.msra.mxu0 %v131
    %411 = vmatprep.subr.mxu0 %v138
    %412 = vmatpush1.msra.mxu0 %v137
    %413 = vmatprep.subr.mxu0 %v144
    %414 = vmatpush1.msra.mxu0 %v143
    %415 = vmatprep.subr.mxu0 %v150
    %416 = vmatpush1.msra.mxu0 %v149
    %417 = vmatprep.subr.mxu0 %v156
    %418 = vmatpush1.msra.mxu0 %v155
    %419 = vmatprep.subr.mxu0 %v162
    %420 = vmatpush1.msra.mxu0 %v161
    %421 = vmatprep.subr.mxu0 %v168
    %422 = vmatpush1.msra.mxu0 %v167
    %423 = vmatprep.subr.mxu0 %v174
    %424 = vmatpush1.msra.mxu0 %v173
    %425 = vmatprep.subr.mxu0 %v180
    %426 = vmatpush1.msra.mxu0 %v179
    %427 = vmatprep.subr.mxu0 %v186
    %428 = vmatpush1.msra.mxu0 %v185
    %429 = vmatprep.subr.mxu0 %v192
    %430 = vmatpush1.msra.mxu0 %v191
    %431 = vmatprep.subr.mxu0 %v198
    %432 = vmatpush1.msra.mxu0 %v197
    %433 = vmatprep.subr.mxu0 %v204
    %434 = vmatpush1.msra.mxu0 %v203
    %435 = vmatprep.subr.mxu0 %v210
    %436 = vmatpush1.msra.mxu0 %v209
    %437 = vmatprep.subr.mxu0 %v216
    %438 = vmatpush1.msra.mxu0 %v215
    %439 = vmatprep.subr.mxu0 %v222
    %440 = vmatpush1.msra.mxu0 %v221
    %441 = vmatprep.subr.mxu0 %v228
    %442 = vmatpush1.msra.mxu0 %v227
    %443 = vmatprep.subr.mxu0 %v234
    %444 = vmatpush1.msra.mxu0 %v233
    %445 = vmatprep.subr.mxu0 %v240
    %446 = vmatpush1.msra.mxu0 %v239
    %447 = vmatprep.mubr.f32.mxu0 %v48
    %448 = vmatmul.mubr.f32.gmra.mrb[0].mxu0 %v47
    %v449 = vpop.f32.mrb[0].mxu0
    %v450 = vadd.f32 0.0, %v449
    %v451 = vpop.f32.mrb[0].mxu0
    %v452 = vadd.f32 0.0, %v451
    %453 = vdwg.mxu0
    %v454 = vmul.f32 %v450, %v450
    %v455 = vmul.f32 %v452, %v452
    %v456 = vadd.f32 %v454, %v455
    %v457 = vrsqrt.pop %v456
    %v458 = vmul.f32 %v456, %v457
    %vm459 = vcmp.eq.f32.partialorder %v456, inf
    %v460 = vsel %vm459, %v456, %v458
    %vm461 = vcmp.eq.f32.partialorder %v456, 0.0
    %v462 = vand.u32 %v456, 2147483648
    %v463 = vsel %vm461, %v462, %v460
    %464 = vst [vmem:[%s5] sm:$0x3f] %v463
    %v465 = vld [vmem:[%s1] sm:$0x3f]
    %v466 = vld [vmem:[%s1 + $0x8] sm:$0x3f]
    %v467 = vmul.f32 %v308, %v465
    %v468 = vmul.f32 %v310, %v466
    %v469 = vmul.f32 %v379, %v465
    %v470 = vmul.f32 %v381, %v466
    %v471 = vld [vmem:[#allocation4] sm:$0xff]
    %v472 = vld [vmem:[#allocation4 + $0x8] sm:$0xff]
    %v473 = vld [vmem:[#allocation4 + $0x10] sm:$0xff]
    %v474 = vld [vmem:[#allocation4 + $0x18] sm:$0xff]
    %v475 = vld [vmem:[#allocation4 + $0x20] sm:$0xff]
    %v476 = vld [vmem:[#allocation4 + $0x28] sm:$0xff]
    %v477 = vld [vmem:[#allocation4 + $0x30] sm:$0xff]
    %v478 = vld [vmem:[#allocation4 + $0x38] sm:$0xff]
    %v479 = vld [vmem:[#allocation4 + $0x40] sm:$0xff]
    %v480 = vld [vmem:[#allocation4 + $0x48] sm:$0xff]
    %v481 = vld [vmem:[#allocation4 + $0x50] sm:$0xff]
    %v482 = vld [vmem:[#allocation4 + $0x58] sm:$0xff]
    %v483 = vld [vmem:[#allocation4 + $0x60] sm:$0xff]
    %v484 = vld [vmem:[#allocation4 + $0x68] sm:$0xff]
    %v485 = vld [vmem:[#allocation4 + $0x70] sm:$0xff]
    %v486 = vld [vmem:[#allocation4 + $0x78] sm:$0xff]
    %v487 = vld [vmem:[#allocation4 + $0x80] sm:$0xff]
    %v488 = vld [vmem:[#allocation4 + $0x88] sm:$0xff]
    %v489 = vld [vmem:[#allocation4 + $0x90] sm:$0xff]
    %v490 = vld [vmem:[#allocation4 + $0x98] sm:$0xff]
    %v491 = vld [vmem:[#allocation4 + $0xa0] sm:$0xff]
    %v492 = vld [vmem:[#allocation4 + $0xa8] sm:$0xff]
    %v493 = vld [vmem:[#allocation4 + $0xb0] sm:$0xff]
    %v494 = vld [vmem:[#allocation4 + $0xb8] sm:$0xff]
    %v495 = vld [vmem:[#allocation4 + $0xc0] sm:$0xff]
    %v496 = vld [vmem:[#allocation4 + $0xc8] sm:$0xff]
    %v497 = vld [vmem:[#allocation4 + $0xd0] sm:$0xff]
    %v498 = vld [vmem:[#allocation4 + $0xd8] sm:$0xff]
    %v499 = vld [vmem:[#allocation4 + $0xe0] sm:$0xff]
    %v500 = vld [vmem:[#allocation4 + $0xe8] sm:$0xff]
    %v501 = vld [vmem:[#allocation4 + $0xf0] sm:$0xff]
    %v502 = vld [vmem:[#allocation4 + $0xf8] sm:$0xff]
    %v503 = vld [vmem:[#allocation4 + $0x100] sm:$0xff]
    %v504 = vld [vmem:[#allocation4 + $0x108] sm:$0xff]
    %v505 = vld [vmem:[#allocation4 + $0x110] sm:$0xff]
    %v506 = vld [vmem:[#allocation4 + $0x118] sm:$0xff]
    %v507 = vld [vmem:[#allocation4 + $0x120] sm:$0xff]
    %v508 = vld [vmem:[#allocation4 + $0x128] sm:$0xff]
    %v509 = vld [vmem:[#allocation4 + $0x130] sm:$0xff]
    %v510 = vld [vmem:[#allocation4 + $0x138] sm:$0xff]
    %v511 = vld [vmem:[#allocation4 + $0x140] sm:$0xff]
    %v512 = vld [vmem:[#allocation4 + $0x148] sm:$0xff]
    %v513 = vld [vmem:[#allocation4 + $0x150] sm:$0xff]
    %v514 = vld [vmem:[#allocation4 + $0x158] sm:$0xff]
    %v515 = vld [vmem:[#allocation4 + $0x160] sm:$0xff]
    %v516 = vld [vmem:[#allocation4 + $0x168] sm:$0xff]
    %v517 = vld [vmem:[#allocation4 + $0x170] sm:$0xff]
    %v518 = vld [vmem:[#allocation4 + $0x178] sm:$0xff]
    %v519 = vld [vmem:[#allocation4 + $0x180] sm:$0xff]
    %v520 = vld [vmem:[#allocation4 + $0x188] sm:$0xff]
    %v521 = vld [vmem:[#allocation4 + $0x190] sm:$0xff]
    %v522 = vld [vmem:[#allocation4 + $0x198] sm:$0xff]
    %v523 = vld [vmem:[#allocation4 + $0x1a0] sm:$0xff]
    %v524 = vld [vmem:[#allocation4 + $0x1a8] sm:$0xff]
    %v525 = vld [vmem:[#allocation4 + $0x1b0] sm:$0xff]
    %v526 = vld [vmem:[#allocation4 + $0x1b8] sm:$0xff]
    %v527 = vld [vmem:[#allocation4 + $0x1c0] sm:$0xff]
    %v528 = vld [vmem:[#allocation4 + $0x1c8] sm:$0xff]
    %v529 = vld [vmem:[#allocation4 + $0x1d0] sm:$0xff]
    %v530 = vld [vmem:[#allocation4 + $0x1d8] sm:$0xff]
    %v531 = vld [vmem:[#allocation4 + $0x1e0] sm:$0xff]
    %v532 = vld [vmem:[#allocation4 + $0x1e8] sm:$0xff]
    %v533 = vld [vmem:[#allocation4 + $0x1f0] sm:$0xff]
    %v534 = vld [vmem:[#allocation4 + $0x1f8] sm:$0xff]
    %v535 = vld [vmem:[#allocation4 + $0x200] sm:$0xff]
    %v536 = vld [vmem:[#allocation4 + $0x208] sm:$0xff]
    %v537 = vld [vmem:[#allocation4 + $0x210] sm:$0xff]
    %v538 = vld [vmem:[#allocation4 + $0x218] sm:$0xff]
    %v539 = vld [vmem:[#allocation4 + $0x220] sm:$0xff]
    %v540 = vld [vmem:[#allocation4 + $0x228] sm:$0xff]
    %v541 = vld [vmem:[#allocation4 + $0x230] sm:$0xff]
    %v542 = vld [vmem:[#allocation4 + $0x238] sm:$0xff]
    %v543 = vld [vmem:[#allocation4 + $0x240] sm:$0xff]
    %v544 = vld [vmem:[#allocation4 + $0x248] sm:$0xff]
    %v545 = vld [vmem:[#allocation4 + $0x250] sm:$0xff]
    %v546 = vld [vmem:[#allocation4 + $0x258] sm:$0xff]
    %v547 = vld [vmem:[#allocation4 + $0x260] sm:$0xff]
    %v548 = vld [vmem:[#allocation4 + $0x268] sm:$0xff]
    %v549 = vld [vmem:[#allocation4 + $0x270] sm:$0xff]
    %v550 = vld [vmem:[#allocation4 + $0x278] sm:$0xff]
    %v551 = vld [vmem:[#allocation4 + $0x280] sm:$0xff]
    %v552 = vld [vmem:[#allocation4 + $0x288] sm:$0xff]
    %v553 = vld [vmem:[#allocation4 + $0x290] sm:$0xff]
    %v554 = vld [vmem:[#allocation4 + $0x298] sm:$0xff]
    %v555 = vld [vmem:[#allocation4 + $0x2a0] sm:$0xff]
    %v556 = vld [vmem:[#allocation4 + $0x2a8] sm:$0xff]
    %v557 = vld [vmem:[#allocation4 + $0x2b0] sm:$0xff]
    %v558 = vld [vmem:[#allocation4 + $0x2b8] sm:$0xff]
    %v559 = vld [vmem:[#allocation4 + $0x2c0] sm:$0xff]
    %v560 = vld [vmem:[#allocation4 + $0x2c8] sm:$0xff]
    %v561 = vld [vmem:[#allocation4 + $0x2d0] sm:$0xff]
    %v562 = vld [vmem:[#allocation4 + $0x2d8] sm:$0xff]
    %v563 = vld [vmem:[#allocation4 + $0x2e0] sm:$0xff]
    %v564 = vld [vmem:[#allocation4 + $0x2e8] sm:$0xff]
    %v565 = vld [vmem:[#allocation4 + $0x2f0] sm:$0xff]
    %v566 = vld [vmem:[#allocation4 + $0x2f8] sm:$0xff]
    %v567 = vld [vmem:[#allocation4 + $0x300] sm:$0xff]
    %v568 = vld [vmem:[#allocation4 + $0x308] sm:$0xff]
    %v569 = vld [vmem:[#allocation4 + $0x310] sm:$0xff]
    %v570 = vld [vmem:[#allocation4 + $0x318] sm:$0xff]
    %v571 = vld [vmem:[#allocation4 + $0x320] sm:$0xff]
    %v572 = vld [vmem:[#allocation4 + $0x328] sm:$0xff]
    %v573 = vld [vmem:[#allocation4 + $0x330] sm:$0xff]
    %v574 = vld [vmem:[#allocation4 + $0x338] sm:$0xff]
    %v575 = vld [vmem:[#allocation4 + $0x340] sm:$0xff]
    %v576 = vld [vmem:[#allocation4 + $0x348] sm:$0xff]
    %v577 = vld [vmem:[#allocation4 + $0x350] sm:$0xff]
    %v578 = vld [vmem:[#allocation4 + $0x358] sm:$0xff]
    %v579 = vld [vmem:[#allocation4 + $0x360] sm:$0xff]
    %v580 = vld [vmem:[#allocation4 + $0x368] sm:$0xff]
    %v581 = vld [vmem:[#allocation4 + $0x370] sm:$0xff]
    %v582 = vld [vmem:[#allocation4 + $0x378] sm:$0xff]
    %v583 = vld [vmem:[#allocation4 + $0x380] sm:$0xff]
    %v584 = vld [vmem:[#allocation4 + $0x388] sm:$0xff]
    %v585 = vld [vmem:[#allocation4 + $0x390] sm:$0xff]
    %v586 = vld [vmem:[#allocation4 + $0x398] sm:$0xff]
    %v587 = vld [vmem:[#allocation4 + $0x3a0] sm:$0xff]
    %v588 = vld [vmem:[#allocation4 + $0x3a8] sm:$0xff]
    %v589 = vld [vmem:[#allocation4 + $0x3b0] sm:$0xff]
    %v590 = vld [vmem:[#allocation4 + $0x3b8] sm:$0xff]
    %v591 = vld [vmem:[#allocation4 + $0x3c0] sm:$0xff]
    %v592 = vld [vmem:[#allocation4 + $0x3c8] sm:$0xff]
    %v593 = vld [vmem:[#allocation4 + $0x3d0] sm:$0xff]
    %v594 = vld [vmem:[#allocation4 + $0x3d8] sm:$0xff]
    %v595 = vld [vmem:[#allocation4 + $0x3e0] sm:$0xff]
    %v596 = vld [vmem:[#allocation4 + $0x3e8] sm:$0xff]
    %v597 = vld [vmem:[#allocation4 + $0x3f0] sm:$0xff]
    %v598 = vld [vmem:[#allocation4 + $0x3f8] sm:$0xff]
    %599 = vmatprep.subr.mxu0 %v472
    %600 = vmatpush1.msra.mxu0 %v471
    %601 = vmatprep.subr.mxu0 %v474
    %602 = vmatpush1.msra.mxu0 %v473
    %603 = vmatprep.subr.mxu0 %v476
    %604 = vmatpush1.msra.mxu0 %v475
    %605 = vmatprep.subr.mxu0 %v478
    %606 = vmatpush1.msra.mxu0 %v477
    %607 = vmatprep.subr.mxu0 %v480
    %608 = vmatpush1.msra.mxu0 %v479
    %609 = vmatprep.subr.mxu0 %v482
    %610 = vmatpush1.msra.mxu0 %v481
    %611 = vmatprep.subr.mxu0 %v484
    %612 = vmatpush1.msra.mxu0 %v483
    %613 = vmatprep.subr.mxu0 %v486
    %614 = vmatpush1.msra.mxu0 %v485
    %615 = vmatprep.subr.mxu0 %v488
    %616 = vmatpush1.msra.mxu0 %v487
    %617 = vmatprep.subr.mxu0 %v490
    %618 = vmatpush1.msra.mxu0 %v489
    %619 = vmatprep.subr.mxu0 %v492
    %620 = vmatpush1.msra.mxu0 %v491
    %621 = vmatprep.subr.mxu0 %v494
    %622 = vmatpush1.msra.mxu0 %v493
    %623 = vmatprep.subr.mxu0 %v496
    %624 = vmatpush1.msra.mxu0 %v495
    %625 = vmatprep.subr.mxu0 %v498
    %626 = vmatpush1.msra.mxu0 %v497
    %627 = vmatprep.subr.mxu0 %v500
    %628 = vmatpush1.msra.mxu0 %v499
    %629 = vmatprep.subr.mxu0 %v502
    %630 = vmatpush1.msra.mxu0 %v501
    %631 = vmatprep.subr.mxu0 %v504
    %632 = vmatpush1.msra.mxu0 %v503
    %633 = vmatprep.subr.mxu0 %v506
    %634 = vmatpush1.msra.mxu0 %v505
    %635 = vmatprep.subr.mxu0 %v508
    %636 = vmatpush1.msra.mxu0 %v507
    %637 = vmatprep.subr.mxu0 %v510
    %638 = vmatpush1.msra.mxu0 %v509
    %639 = vmatprep.subr.mxu0 %v512
    %640 = vmatpush1.msra.mxu0 %v511
    %641 = vmatprep.subr.mxu0 %v514
    %642 = vmatpush1.msra.mxu0 %v513
    %643 = vmatprep.subr.mxu0 %v516
    %644 = vmatpush1.msra.mxu0 %v515
    %645 = vmatprep.subr.mxu0 %v518
    %646 = vmatpush1.msra.mxu0 %v517
    %647 = vmatprep.subr.mxu0 %v520
    %648 = vmatpush1.msra.mxu0 %v519
    %649 = vmatprep.subr.mxu0 %v522
    %650 = vmatpush1.msra.mxu0 %v521
    %651 = vmatprep.subr.mxu0 %v524
    %652 = vmatpush1.msra.mxu0 %v523
    %653 = vmatprep.subr.mxu0 %v526
    %654 = vmatpush1.msra.mxu0 %v525
    %655 = vmatprep.subr.mxu0 %v528
    %656 = vmatpush1.msra.mxu0 %v527
    %657 = vmatprep.subr.mxu0 %v530
    %658 = vmatpush1.msra.mxu0 %v529
    %659 = vmatprep.subr.mxu0 %v532
    %660 = vmatpush1.msra.mxu0 %v531
    %661 = vmatprep.subr.mxu0 %v534
    %662 = vmatpush1.msra.mxu0 %v533
    %663 = vmatprep.mubr.f32.mxu0 %v468
    %664 = vmatmul.mubr.f32.gmra.mrb[0].mxu0 %v467
    %v665 = vpop.f32.mrb[0].mxu0
    %v666 = vadd.f32 0.0, %v665
    %v667 = vpop.f32.mrb[0].mxu0
    %v668 = vadd.f32 0.0, %v667
    %669 = vdwg.mxu0
    %670 = vmatprep.subr.mxu0 %v536
    %671 = vmatpush1.msra.mxu0 %v535
    %672 = vmatprep.subr.mxu0 %v538
    %673 = vmatpush1.msra.mxu0 %v537
    %674 = vmatprep.subr.mxu0 %v540
    %675 = vmatpush1.msra.mxu0 %v539
    %676 = vmatprep.subr.mxu0 %v542
    %677 = vmatpush1.msra.mxu0 %v541
    %678 = vmatprep.subr.mxu0 %v544
    %679 = vmatpush1.msra.mxu0 %v543
    %680 = vmatprep.subr.mxu0 %v546
    %681 = vmatpush1.msra.mxu0 %v545
    %682 = vmatprep.subr.mxu0 %v548
    %683 = vmatpush1.msra.mxu0 %v547
    %684 = vmatprep.subr.mxu0 %v550
    %685 = vmatpush1.msra.mxu0 %v549
    %686 = vmatprep.subr.mxu0 %v552
    %687 = vmatpush1.msra.mxu0 %v551
    %688 = vmatprep.subr.mxu0 %v554
    %689 = vmatpush1.msra.mxu0 %v553
    %690 = vmatprep.subr.mxu0 %v556
    %691 = vmatpush1.msra.mxu0 %v555
    %692 = vmatprep.subr.mxu0 %v558
    %693 = vmatpush1.msra.mxu0 %v557
    %694 = vmatprep.subr.mxu0 %v560
    %695 = vmatpush1.msra.mxu0 %v559
    %696 = vmatprep.subr.mxu0 %v562
    %697 = vmatpush1.msra.mxu0 %v561
    %698 = vmatprep.subr.mxu0 %v564
    %699 = vmatpush1.msra.mxu0 %v563
    %700 = vmatprep.subr.mxu0 %v566
    %701 = vmatpush1.msra.mxu0 %v565
    %702 = vmatprep.subr.mxu0 %v568
    %703 = vmatpush1.msra.mxu0 %v567
    %704 = vmatprep.subr.mxu0 %v570
    %705 = vmatpush1.msra.mxu0 %v569
    %706 = vmatprep.subr.mxu0 %v572
    %707 = vmatpush1.msra.mxu0 %v571
    %708 = vmatprep.subr.mxu0 %v574
    %709 = vmatpush1.msra.mxu0 %v573
    %710 = vmatprep.subr.mxu0 %v576
    %711 = vmatpush1.msra.mxu0 %v575
    %712 = vmatprep.subr.mxu0 %v578
    %713 = vmatpush1.msra.mxu0 %v577
    %714 = vmatprep.subr.mxu0 %v580
    %715 = vmatpush1.msra.mxu0 %v579
    %716 = vmatprep.subr.mxu0 %v582
    %717 = vmatpush1.msra.mxu0 %v581
    %718 = vmatprep.subr.mxu0 %v584
    %719 = vmatpush1.msra.mxu0 %v583
    %720 = vmatprep.subr.mxu0 %v586
    %721 = vmatpush1.msra.mxu0 %v585
    %722 = vmatprep.subr.mxu0 %v588
    %723 = vmatpush1.msra.mxu0 %v587
    %724 = vmatprep.subr.mxu0 %v590
    %725 = vmatpush1.msra.mxu0 %v589
    %726 = vmatprep.subr.mxu0 %v592
    %727 = vmatpush1.msra.mxu0 %v591
    %728 = vmatprep.subr.mxu0 %v594
    %729 = vmatpush1.msra.mxu0 %v593
    %730 = vmatprep.subr.mxu0 %v596
    %731 = vmatpush1.msra.mxu0 %v595
    %732 = vmatprep.subr.mxu0 %v598
    %733 = vmatpush1.msra.mxu0 %v597
    %734 = vmatprep.mubr.f32.mxu0 %v470
    %735 = vmatmul.mubr.f32.gmra.mrb[0].mxu0 %v469
    %v736 = vpop.f32.mrb[0].mxu0
    %v737 = vadd.f32 %v666, %v736
    %v738 = vpop.f32.mrb[0].mxu0
    %v739 = vadd.f32 %v668, %v738
    %740 = vdwg.mxu0
    %741 = vst [vmem:[%s4] sm:$0x3f] %v737
    %742 = vst [vmem:[%s4 + $0x8] sm:$0x3f] %v739
    // Predicated region
    $region26: #{prompt_forward.1} parent=1 // pred_check
      _
    $region27: #{prompt_forward.1} parent=1 // pred_check_branch
      %744 = sbr.rel (0) target = $region29
    $region28: #{prompt_forward.1} parent=1 // pred_region
      _
    $region29: #{prompt_forward.1} parent=1 // pred_fallthru
      _
    // Predicated region
    $region30: #{prompt_forward.1} parent=1 // pred_check
      _
    $region31: #{prompt_forward.1} parent=1 // pred_check_branch
      %746 = sbr.rel (0) target = $region33
    $region32: #{prompt_forward.1} parent=1 // pred_region
      _
    $region33: #{prompt_forward.1} parent=1 // pred_fallthru
      _
    // Predicated region
    $region34: #{prompt_forward.1} parent=1 // pred_check
      _
    $region35: #{prompt_forward.1} parent=1 // pred_check_branch
      %748 = sbr.rel (0) target = $region37
    $region36: #{prompt_forward.1} parent=1 // pred_region
      _
    $region37: #{prompt_forward.1} parent=1 // pred_fallthru
      _
    // Predicated region
    $region38: #{prompt_forward.1} parent=1 // pred_check
      _
    $region39: #{prompt_forward.1} parent=1 // pred_check_branch
      %750 = sbr.rel (0) target = $region41
    $region40: #{prompt_forward.1} parent=1 // pred_region
      _
    $region41: #{prompt_forward.1} parent=1 // pred_fallthru
      _
    %751 = vsyncpa [#allocation3], 1
    %752 = vsyncpa [#allocation5], 1

</llo_original>
